<compile_context>
chip_gen: v5e
topology: v5e:2x2
jax: 0.10.0
libtpu: 0.0.40
codegen_flags: <defaults>
</compile_context>

<pallas_src>
import jax
import jax.numpy as jnp
from jax import lax
from jax.experimental import pallas as pl
from jax.experimental.pallas import tpu as pltpu

_LANE = 128
_SUBLANE = 8
_TARGET_BLOCK_BYTES = 8 << 20     # ~8 MiB blocks (mem-bound copy, amortize step overhead)
_MAX_UNROLL_FRAMES = 32           # fully unroll the per-frame copy up to this many frames


def _vmem_capacity_bytes():
    """Best-effort per-core VMEM query; conservative default = 64 MiB (v7x)."""
    try:
        info = pltpu.get_tpu_info()
        cap = int(getattr(info, "vmem_capacity_bytes"))
        if cap > 0:
            return cap
    except Exception:
        pass
    return 64 << 20


def _largest_divisor_at_most(n, limit):
    """Largest divisor of n that is <= limit (at least 1)."""
    best = 1
    for d in range(1, n + 1):
        if d > limit:
            break
        if n % d == 0:
            best = d
    return best


def _pick_tiling(F, N, D, itemsize, block_bytes):
    """Choose (TF, TN) so the (TF, TN, D) block fits `block_bytes`.

    Returns None if no legal tiling exists (caller falls back to plain JAX).
    """
    frame_bytes = N * D * itemsize
    if frame_bytes <= block_bytes:
        # Whole frames fit: tile over frames only (keeps writeback chunks
        # TF*D*itemsize as large as the budget allows).
        tf = _largest_divisor_at_most(F, max(1, block_bytes // frame_bytes))
        return tf, N
    # A single frame exceeds the budget: tile the token (N) axis instead.
    row_bytes = D * itemsize
    max_rows = block_bytes // row_bytes
    tn = None
    for cand in range(_SUBLANE, N + 1, _SUBLANE):   # TN must be a multiple of 8
        if cand > max_rows:
            break
        if N % cand == 0:
            tn = cand
    if tn is None:
        return None
    return 1, tn


def _maybe_split_for_cores(b, F, tf, N, tn):
    """Prefer >= 2 grid steps so v7x's two TensorCores both get work."""
    steps = b * (F // tf) * (N // tn)
    if steps >= 2 or tf <= 1:
        return tf, tn
    new_tf = _largest_divisor_at_most(F, max(1, tf // 2))
    if F // new_tf >= 2:
        return new_tf, tn
    return tf, tn


def _make_copy_kernel(tf, d):
    """Per-grid-step body: (TF, TN, D) -> (1, TN, TF*D) lane-dense copy."""
    if tf <= _MAX_UNROLL_FRAMES:
        def kernel(x_ref, o_ref):
            for k in range(tf):                       # static, lane-aligned stores
                o_ref[0, :, k * d:(k + 1) * d] = x_ref[k]
    else:
        def kernel(x_ref, o_ref):
            def body(k, carry):
                off = pl.multiple_of(k * d, _LANE)    # lane-aligned dynamic store
                o_ref[0, :, pl.ds(off, d)] = x_ref[k]
                return carry
            lax.fori_loop(0, tf, body, 0, unroll=8)
    return kernel


def _rearrange_ref(x, b):
    """Plain-JAX reference / fallback for '(b f) n d -> (b n) f d'."""
    BF, N, D = x.shape
    F = BF // b
    return x.reshape(b, F, N, D).transpose(0, 2, 1, 3).reshape(b * N, F, D)


def rearrange_bf_n_d__to__bn_f_d(x, b, block_bytes_budget=None):
    """Pallas implementation of rearrange(x, '(b f) n d -> (b n) f d', b=b)."""
    BF, N, D = x.shape
    assert BF % b == 0, "leading dim must be divisible by b"
    F = BF // b

    if D % _LANE != 0 or F == 0:
        # TODO(synk): non-lane-aligned feature dims fall back to plain JAX
        # (XLA fuses the transpose); a Pallas copy would only add a
        # materialization boundary here.
        return _rearrange_ref(x, b)

    itemsize = jnp.dtype(x.dtype).itemsize
    vmem_cap = _vmem_capacity_bytes()
    if block_bytes_budget is None:
        block_bytes_budget = min(_TARGET_BLOCK_BYTES, vmem_cap // 8)

    tiling = _pick_tiling(F, N, D, itemsize, block_bytes_budget)
    if tiling is None:
        return _rearrange_ref(x, b)
    TF, TN = tiling
    TF, TN = _maybe_split_for_cores(b, F, TF, N, TN)

    n_fblocks = F // TF
    n_nblocks = N // TN
    block_bytes = TF * TN * D * itemsize

    # 2 input + 2 output double-buffered blocks + headroom, capped at 3/4 of
    # physical VMEM so it is legal on every generation (v7x = 64 MiB per TC).
    vmem_limit = int(min(vmem_cap * 3 // 4, 4 * block_bytes + (16 << 20)))

    # Grid (batch, token-block, frame-block).  For grid point (ib, jn, jt):
    #   input block  = x[ib*F + jt*TF : ib*F + (jt+1)*TF, jn*TN:(jn+1)*TN, :]
    #   output block = slab[ib, jn*TN:(jn+1)*TN, jt*TF*D : (jt+1)*TF*D]
    # The slab (b, N, F*D) is a lane-dense view of (b, N, F, D); the final
    # reshapes below are free and give (b*N, F, D) == '(b n) f d'.
    slab = pl.pallas_call(
        _make_copy_kernel(TF, D),
        out_shape=jax.ShapeDtypeStruct((b, N, F * D), x.dtype),
        grid_spec=pltpu.PrefetchScalarGridSpec(
            num_scalar_prefetch=0,
            grid=(b, n_nblocks, n_fblocks),
            in_specs=[
                pl.BlockSpec((TF, TN, D),
                             lambda ib, jn, jt: (ib * n_fblocks + jt, jn, 0)),
            ],
            out_specs=pl.BlockSpec((1, TN, TF * D),
                                   lambda ib, jn, jt: (ib, jn, jt)),
        ),
        compiler_params=pltpu.CompilerParams(
            dimension_semantics=("parallel", "parallel", "parallel"),
            vmem_limit_bytes=vmem_limit,
        ),
        cost_estimate=pl.CostEstimate(
            flops=0, transcendentals=0,
            bytes_accessed=2 * x.size * itemsize),
    )(x)

    return slab.reshape(b, N, F, D).reshape(b * N, F, D)


class RearrangeCustom:
    """JAX/Pallas analogue of the PyTorch RearrangeCustom module.

    The '(b f) n d -> (b n) f d' STAM hot path is lowered to the Pallas
    kernel; the module itself carries no parameters.
    """

    def __init__(self, r_str, **kwargs):
        self.r_str = r_str
        self.args = kwargs

    def __call__(self, x, b, **kw):
        if self.r_str.replace(" ", "") == "(bf)nd->(bn)fd":
            return rearrange_bf_n_d__to__bn_f_d(x, b, **kw)
        # TODO(synk): other rearrange strings are pure reshapes/permutes with
        # no compute hot path; they are left to plain JAX / XLA fusion.
        raise NotImplementedError(self.r_str)


if __name__ == "__main__":
    key = jax.random.PRNGKey(0)
    mod = RearrangeCustom("(b f) n d -> (b n) f d")

    # --- Test 1: lane-aligned hot path, whole frames per block (TF == F).
    b, f, n, d = 2, 4, 8, 128
    x = jax.random.normal(key, (b * f, n, d), dtype=jnp.float32)
    out = jax.block_until_ready(mod(x, b))
    ref = _rearrange_ref(x, b)
    assert out.shape == (b * n, f, d), out.shape
    assert out.dtype == x.dtype
    assert jnp.array_equal(out, ref), "mismatch vs reference (TF=F)"

    # --- Test 2: force TF < F (multi frame-block grid) via a tiny block budget.
    out2 = jax.block_until_ready(
        mod(x, b, block_bytes_budget=2 * n * d * 4))    # forces TF=2
    assert jnp.array_equal(out2, ref), "mismatch vs reference (TF<F)"

    # --- Test 3: single frame exceeds budget -> N-tiling path (TF=1, TN=8).
    b3, f3, n3, d3 = 2, 2, 16, 128
    x3 = jax.random.normal(key, (b3 * f3, n3, d3), dtype=jnp.float32)
    out3 = jax.block_until_ready(
        mod(x3, b3, block_bytes_budget=_SUBLANE * d3 * 4))
    assert jnp.array_equal(out3, _rearrange_ref(x3, b3)), "mismatch (N-tiled)"

    # --- Test 4: many frames per block -> bounded-unroll fori_loop body.
    b4, f4, n4, d4 = 2, 64, 8, 128
    x4 = jax.random.normal(key, (b4 * f4, n4, d4), dtype=jnp.float32)
    out4 = jax.block_until_ready(mod(x4, b4))
    assert jnp.array_equal(out4, _rearrange_ref(x4, b4)), "mismatch (fori_loop)"

    # --- Test 5: bf16, b=1 with degenerate grid -> frame axis split for cores.
    b5, f5, n5, d5 = 1, 2, 8, 256
    x5 = jax.random.normal(key, (b5 * f5, n5, d5), dtype=jnp.bfloat16)
    out5 = jax.block_until_ready(mod(x5, b5))
    assert jnp.array_equal(out5, _rearrange_ref(x5, b5)), "mismatch (bf16/split)"

    # --- Test 6: non-lane-aligned D falls back to plain JAX.
    x6 = jax.random.normal(key, (b * f, n, 64), dtype=jnp.float32)
    out6 = jax.block_until_ready(mod(x6, b))
    assert jnp.array_equal(out6, _rearrange_ref(x6, b)), "fallback mismatch"

    print("KERNEL_OK")
</pallas_src>

<mosaic_0001>
module attributes {stable_mosaic.version = 11 : i64} {
  func.func @kernel(%arg0: i32, %arg1: i32, %arg2: i32, %arg3: memref<4x8x128xf32, #tpu.memory_space<vmem>>, %arg4: memref<1x8x512xf32, #tpu.memory_space<vmem>>) attributes {dimension_semantics = [#tpu.dimension_semantics<parallel>, #tpu.dimension_semantics<parallel>, #tpu.dimension_semantics<parallel>], iteration_bounds = array<i64: 2, 1, 1>, scalar_prefetch = 0 : i64, scratch_operands = 0 : i64, tpu.core_type = #tpu.core_type<tc>, window_params = [{transform_indices = @transform_0, window_bounds = array<i64: 4, 8, 128>}, {transform_indices = @transform_1, window_bounds = array<i64: 1, 8, 512>}]} {
    %c0 = arith.constant 0 : index
    %c0_0 = arith.constant 0 : index
    %c0_1 = arith.constant 0 : index
    %0 = vector.load %arg3[%c0, %c0_0, %c0_1] : memref<4x8x128xf32, #tpu.memory_space<vmem>>, vector<1x8x128xf32>
    %1 = vector.shape_cast %0 : vector<1x8x128xf32> to vector<8x128xf32>
    %c0_2 = arith.constant 0 : index
    %c0_3 = arith.constant 0 : index
    %c0_4 = arith.constant 0 : index
    %2 = vector.load %arg4[%c0_2, %c0_3, %c0_4] : memref<1x8x512xf32, #tpu.memory_space<vmem>>, vector<1x8x128xf32>
    %3 = vector.shape_cast %2 : vector<1x8x128xf32> to vector<8x128xf32>
    %4 = vector.shape_cast %1 : vector<8x128xf32> to vector<1x8x128xf32>
    tpu.vector_store %arg4[%c0_2, %c0_3, %c0_4], %4 {strides = array<i32>} : memref<1x8x512xf32, #tpu.memory_space<vmem>>, vector<1x8x128xf32>,
    %c1 = arith.constant 1 : index
    %c0_5 = arith.constant 0 : index
    %c0_6 = arith.constant 0 : index
    %5 = vector.load %arg3[%c1, %c0_5, %c0_6] : memref<4x8x128xf32, #tpu.memory_space<vmem>>, vector<1x8x128xf32>
    %6 = vector.shape_cast %5 : vector<1x8x128xf32> to vector<8x128xf32>
    %c0_7 = arith.constant 0 : index
    %c0_8 = arith.constant 0 : index
    %c128 = arith.constant 128 : index
    %7 = vector.load %arg4[%c0_7, %c0_8, %c128] : memref<1x8x512xf32, #tpu.memory_space<vmem>>, vector<1x8x128xf32>
    %8 = vector.shape_cast %7 : vector<1x8x128xf32> to vector<8x128xf32>
    %9 = vector.shape_cast %6 : vector<8x128xf32> to vector<1x8x128xf32>
    tpu.vector_store %arg4[%c0_7, %c0_8, %c128], %9 {strides = array<i32>} : memref<1x8x512xf32, #tpu.memory_space<vmem>>, vector<1x8x128xf32>,
    %c2 = arith.constant 2 : index
    %c0_9 = arith.constant 0 : index
    %c0_10 = arith.constant 0 : index
    %10 = vector.load %arg3[%c2, %c0_9, %c0_10] : memref<4x8x128xf32, #tpu.memory_space<vmem>>, vector<1x8x128xf32>
    %11 = vector.shape_cast %10 : vector<1x8x128xf32> to vector<8x128xf32>
    %c0_11 = arith.constant 0 : index
    %c0_12 = arith.constant 0 : index
    %c256 = arith.constant 256 : index
    %12 = vector.load %arg4[%c0_11, %c0_12, %c256] : memref<1x8x512xf32, #tpu.memory_space<vmem>>, vector<1x8x128xf32>
    %13 = vector.shape_cast %12 : vector<1x8x128xf32> to vector<8x128xf32>
    %14 = vector.shape_cast %11 : vector<8x128xf32> to vector<1x8x128xf32>
    tpu.vector_store %arg4[%c0_11, %c0_12, %c256], %14 {strides = array<i32>} : memref<1x8x512xf32, #tpu.memory_space<vmem>>, vector<1x8x128xf32>,
    %c3 = arith.constant 3 : index
    %c0_13 = arith.constant 0 : index
    %c0_14 = arith.constant 0 : index
    %15 = vector.load %arg3[%c3, %c0_13, %c0_14] : memref<4x8x128xf32, #tpu.memory_space<vmem>>, vector<1x8x128xf32>
    %16 = vector.shape_cast %15 : vector<1x8x128xf32> to vector<8x128xf32>
    %c0_15 = arith.constant 0 : index
    %c0_16 = arith.constant 0 : index
    %c384 = arith.constant 384 : index
    %17 = vector.load %arg4[%c0_15, %c0_16, %c384] : memref<1x8x512xf32, #tpu.memory_space<vmem>>, vector<1x8x128xf32>
    %18 = vector.shape_cast %17 : vector<1x8x128xf32> to vector<8x128xf32>
    %19 = vector.shape_cast %16 : vector<8x128xf32> to vector<1x8x128xf32>
    tpu.vector_store %arg4[%c0_15, %c0_16, %c384], %19 {strides = array<i32>} : memref<1x8x512xf32, #tpu.memory_space<vmem>>, vector<1x8x128xf32>,
    return
  }
  func.func @transform_0(%arg0: i32, %arg1: i32, %arg2: i32) -> (i32, i32, i32) {
    %c1_i32 = arith.constant 1 : i32
    %0 = arith.muli %arg0, %c1_i32 : i32
    %1 = arith.addi %0, %arg2 : i32
    %c0_i32 = arith.constant 0 : i32
    %c0_i32_0 = arith.constant 0 : i32
    return %1, %arg1, %c0_i32 : i32, i32, i32
  }
  func.func @transform_1(%arg0: i32, %arg1: i32, %arg2: i32) -> (i32, i32, i32) {
    %c0_i32 = arith.constant 0 : i32
    return %arg0, %arg1, %arg2 : i32, i32, i32
  }
}

</mosaic_0001>

<llo_original>
// kernel: tpu_custom_call.1
$region0: #{tpu_custom_call.1}
  #allocation0 [shape = 'u32[]', space=smem, size = 0x4, offset = 0x4, fixed_abs, tag = 'smem constant byte address 0x4 - core index']
  #allocation1 [shape = 'u32[72,128]{1,0:T(1,128)}', space=vmem, size = 0x9000, scoped, tag = 'internal scratch']
  %s0 = inlined_call_operand.hbm [shape: f32[8,8,128], index: 0, kind: input, shape index: {}]
  %s1 = inlined_call_operand.hbm [shape: f32[2,8,512], index: 1, kind: output, shape index: {}]
  %s2 = sld [smem:[#allocation0]]
  $region41: #{tpu_custom_call.1} parent=0
    _
  %s4 = ssub.s32 1, %s2
  %s5 = scalar_select 0, %s4, %s2
  $region1: #{tpu_custom_call.1} parent=0
    #allocation2 [shape = 'u8[32768]{0}', space=vmem, size = 0x8000, scoped, tag = 'input window, operand 0']
    #allocation3 [shape = 's32[2]{0}', space=sflag, size = 0x8, scoped, tag = 'scoped memory for tpu_custom_call.1']
    #allocation4 [shape = 's32[2]{0}', space=sflag, size = 0x8, scoped, tag = 'scoped memory for tpu_custom_call.1']
    #allocation5 [shape = 'u8[32768]{0}', space=vmem, size = 0x8000, scoped, tag = 'output window, operand 0']
    %6 = vsyncpa [#allocation3], 0
    %s7 = scalar_lea.sflag [#allocation3], 1
    %8 = vsyncpa %s7, 0
    %9 = vsyncpa [#allocation4], 0
    %s10 = scalar_lea.sflag [#allocation4], 1
    %11 = vsyncpa %s10, 0
    loop: start=0, step=1, limit=4
    $region2: #{tpu_custom_call.1} parent=1 // loop_pre_header
      _
    $region3: #{tpu_custom_call.1} parent=1 // loop_header
      %s13 = sphi 0, %s17
      %p14 = scmp.ge.s32.totalorder %s13, 4
      %s20 = sphi 0, %s39
      %s21 = sphi 0, %s35
      %s22 = sphi 0, %s31
      %s23 = sphi 0, %s20
      %s24 = sphi 0, %s21
      %s25 = sphi 0, %s22
      %s26 = sphi 0, %s23
      %s27 = sphi 0, %s24
      %s28 = sphi 0, %s25
      %s46 = sphi 0, %s48
      %s49 = sphi 0, %s46
      %s50 = sphi 0, %s49
      %s66 = sphi 0, %s50
      %s76 = sphi 0, %s78
      %s79 = sphi 0, %s76
      %s80 = sphi 0, %s79
      %s96 = sphi 0, %s80
    $region4: #{tpu_custom_call.1} parent=1 // loop_header_branch
      %16 = sbr.rel (%p14) target = $region8
    $region5: #{tpu_custom_call.1} parent=1 // loop_body
      %s18 = ssub.s32 %s13, 1
      %s19 = ssub.s32 %s13, 2
      %s29 = sadd.s32 1, %s22
      %p30 = scmp.ge.s32.totalorder %s29, 1
      %s31 = scalar_select %p30, 0, %s29
      %s32 = sadd.s32 1, %s21
      %s33 = scalar_select %p30, %s32, %s21
      %p34 = scmp.ge.s32.totalorder %s33, 1
      %s35 = scalar_select %p34, 0, %s33
      %s36 = sadd.s32 1, %s20
      %s37 = scalar_select %p34, %s36, %s20
      %p38 = scmp.ge.s32.totalorder %s37, 2
      %s39 = scalar_select %p38, 0, %s37
      %s40 = sadd.s32 %s20, %s22
      %s41 = sadd.s32 %s39, %s31
      %s42 = ssub.s32 %s40, %s41
      %s43 = ssub.s32 %s21, %s35
      %s44 = sor.u32 %s42, %s43
      %p45 = scmp.eq.s32.totalorder %s44, 0
      %s47 = sadd.s32 %s46, 1
      %s48 = scalar_select %p45, %s46, %s47
      %p51 = pneg %p45
      %p52 = scmp.eq.s32.totalorder %s13, 1
      %p53 = por %p51, %p52
      %p54 = scmp.ne.s32.totalorder %s46, %s49
      %p55 = scmp.eq.s32.totalorder %s13, 0
      %p56 = por %p54, %p55
      %p57 = scmp.ne.s32.totalorder %s46, %s49
      %p58 = scmp.eq.s32.totalorder %s18, 1
      %p59 = por %p57, %p58
      %p60 = scmp.ne.s32.totalorder %s49, %s50
      %p61 = scmp.eq.s32.totalorder %s18, 0
      %p62 = por %p60, %p61
      %p63 = scmp.ne.s32.totalorder %s49, %s50
      %p64 = scmp.eq.s32.totalorder %s19, 1
      %p65 = por %p63, %p64
      %p67 = scmp.ne.s32.totalorder %s50, %s66
      %p68 = scmp.eq.s32.totalorder %s19, 0
      %p69 = por %p67, %p68
      %s70 = ssub.s32 %s20, %s39
      %s71 = ssub.s32 %s21, %s35
      %s72 = sor.u32 %s70, %s71
      %s73 = ssub.s32 %s22, %s31
      %s74 = sor.u32 %s72, %s73
      %p75 = scmp.eq.s32.totalorder %s74, 0
      %s77 = sadd.s32 %s76, 1
      %s78 = scalar_select %p75, %s76, %s77
      %p81 = pneg %p75
      %p82 = scmp.eq.s32.totalorder %s13, 1
      %p83 = por %p81, %p82
      %p84 = scmp.ne.s32.totalorder %s76, %s79
      %p85 = scmp.eq.s32.totalorder %s13, 0
      %p86 = por %p84, %p85
      %p87 = scmp.ne.s32.totalorder %s76, %s79
      %p88 = scmp.eq.s32.totalorder %s18, 1
      %p89 = por %p87, %p88
      %p90 = scmp.ne.s32.totalorder %s79, %s80
      %p91 = scmp.eq.s32.totalorder %s18, 0
      %p92 = por %p90, %p91
      %p93 = scmp.ne.s32.totalorder %s79, %s80
      %p94 = scmp.eq.s32.totalorder %s19, 1
      %p95 = por %p93, %p94
      %p97 = scmp.ne.s32.totalorder %s80, %s96
      %p98 = scmp.eq.s32.totalorder %s19, 0
      %p99 = por %p97, %p98
      %p100 = scmp.le.s32.totalorder 1, %s13
      %p101 = scmp.lt.s32.totalorder %s13, 3
      %p102 = pnand %p100, %p101
      %p103 = pneg %p102
      // Predicated region
      $region9: #{tpu_custom_call.1} parent=5 // pred_check
        _
      $region10: #{tpu_custom_call.1} parent=5 // pred_check_branch
        %105 = sbr.rel (%p102) target = $region12
      $region11: #{tpu_custom_call.1} parent=5 // pred_region
        %s106 = ssub.s32 %s13, 1
      $region12: #{tpu_custom_call.1} parent=5 // pred_fallthru
        _
      %p107 = scmp.lt.s32.totalorder %s13, 2
      // Predicated region
      $region13: #{tpu_custom_call.1} parent=5 // pred_check
        %p108 = pneg %p107
      $region14: #{tpu_custom_call.1} parent=5 // pred_check_branch
        %110 = sbr.rel (%p108) target = $region16
      $region15: #{tpu_custom_call.1} parent=5 // pred_region
        // Predicated region
        $region17: #{tpu_custom_call.1} parent=15 // pred_check
          %p111 = pneg %p56
        $region18: #{tpu_custom_call.1} parent=15 // pred_check_branch
          %113 = sbr.rel (%p111) target = $region20
        $region19: #{tpu_custom_call.1} parent=15 // pred_region
          %s114 = sand.u32 %s46, 1
          %s115 = scalar_lea.sflag [#allocation3], %s114
          %s116 = sand.u32 %s46, 1
          %s117 = smul.addr %s116, 32
          %s118 = scalar_lea.vmem [#allocation2], %s117
          %s119 = sadd.s32 %s20, %s22
          %s120 = smul.u32 4, %s119
          %122 = vsyncadd %s115, 0
          %s123 = sadd.s32 %s21, %s120
          %s124 = smul.addr %s123, 8
          %s125 = scalar_lea.hbm %s0, %s124
          %s126 = sshll.u32 %s125, 4
          %s127 = int_to_ptr.hbm [resolvable:$true] %s126
          %s128 = sshll.u32 %s118, 4
          %s129 = int_to_ptr.vmem [resolvable:$true] %s128
          %134 = dma.hbm_to_vmem [thread:$0]  %s127, 512, %s129, %s115, 128, 128, 8
        $region20: #{tpu_custom_call.1} parent=15 // pred_fallthru
          _
      $region16: #{tpu_custom_call.1} parent=5 // pred_fallthru
        _
      %p135 = scmp.le.s32.totalorder 1, %s13
      %p136 = scmp.lt.s32.totalorder %s13, 3
      %p137 = pnand %p135, %p136
      %p138 = pneg %p137
      // Predicated region
      $region21: #{tpu_custom_call.1} parent=5 // pred_check
        _
      $region22: #{tpu_custom_call.1} parent=5 // pred_check_branch
        %140 = sbr.rel (%p137) target = $region24
      $region23: #{tpu_custom_call.1} parent=5 // pred_region
        %s141 = ssub.s32 %s13, 1
        %s142 = sand.u32 %s49, 1
        %s143 = scalar_lea.sflag [#allocation3], %s142
        %s144 = sand.u32 %s49, 1
        %s145 = smul.addr %s144, 32
        %s146 = scalar_lea.vmem [#allocation2], %s145
        // Predicated region
        $region25: #{tpu_custom_call.1} parent=23 // pred_check
          %p147 = pneg %p62
        $region26: #{tpu_custom_call.1} parent=23 // pred_check_branch
          %149 = sbr.rel (%p147) target = $region28
        $region27: #{tpu_custom_call.1} parent=23 // pred_region
          %151 = dma.done %s143, 512
        $region28: #{tpu_custom_call.1} parent=23 // pred_fallthru
          _
        %s152 = sand.u32 %s49, 1
        %s153 = scalar_lea.sflag [#allocation3], %s152
        %s154 = sand.u32 %s49, 1
        %s155 = smul.addr %s154, 32
        %s156 = scalar_lea.vmem [#allocation2], %s155
        %p157 = pneg %p62
        %p158 = pneg %p59
        %p159 = pneg %p92
        %p160 = pneg %p89
        %s161 = sand.u32 %s79, 1
        %s162 = scalar_lea.sflag [#allocation4], %s161
        %s163 = sand.u32 %s79, 1
        %s164 = smul.addr %s163, 32
        %s165 = scalar_lea.vmem [#allocation5], %s164
        %s166 = sadd.s32 %s23, %s25
        %s167 = smul.u32 4, %s166
        %s168 = smul.u32 4, %s25
        %v169 = vld [vmem:[%s146] sm:$0xff]
        %170 = vst [vmem:[%s165] sm:$0xff] %v169
        %s171 = scalar_lea.vmem %s146, 8 [#allocation2]
        %v172 = vld [vmem:[%s171] sm:$0xff]
        %173 = vst [vmem:[%s165 + $0x8] sm:$0xff] %v172
        %s174 = scalar_lea.vmem %s146, 16 [#allocation2]
        %v175 = vld [vmem:[%s174] sm:$0xff]
        %176 = vst [vmem:[%s165 + $0x10] sm:$0xff] %v175
        %s177 = scalar_lea.vmem %s146, 24 [#allocation2]
        %v178 = vld [vmem:[%s177] sm:$0xff]
        %179 = vst [vmem:[%s165 + $0x18] sm:$0xff] %v178
        %s180 = sand.u32 %s79, 1
        %s181 = scalar_lea.sflag [#allocation4], %s180
        %s182 = sand.u32 %s79, 1
        %s183 = smul.addr %s182, 32
        %s184 = scalar_lea.vmem [#allocation5], %s183
        // Predicated region
        $region29: #{tpu_custom_call.1} parent=23 // pred_check
          %p185 = pneg %p89
        $region30: #{tpu_custom_call.1} parent=23 // pred_check_branch
          %187 = sbr.rel (%p185) target = $region32
        $region31: #{tpu_custom_call.1} parent=23 // pred_region
          %s188 = smul.u32 4, %s25
          %190 = vsyncadd %s181, 0
          %s191 = smul.addr %s24, 4
          %s192 = sadd.s32 %s188, %s191
          %s193 = smul.addr %s23, 4
          %s194 = sadd.s32 %s192, %s193
          %s195 = smul.addr %s194, 8
          %s196 = scalar_lea.hbm %s1, %s195
          %s198 = sshll.u32 %s184, 4
          %s199 = int_to_ptr.vmem [resolvable:$true] %s198
          %s200 = sshll.u32 %s196, 4
          %s201 = int_to_ptr.hbm [resolvable:$true] %s200
          %203 = dma.vmem_to_hbm [thread:$0]  %s199, 512, %s201, %s181
        $region32: #{tpu_custom_call.1} parent=23 // pred_fallthru
          _
      $region24: #{tpu_custom_call.1} parent=5 // pred_fallthru
        _
      %p204 = scmp.le.s32.totalorder 2, %s13
      // Predicated region
      $region33: #{tpu_custom_call.1} parent=5 // pred_check
        %p205 = pneg %p204
      $region34: #{tpu_custom_call.1} parent=5 // pred_check_branch
        %207 = sbr.rel (%p205) target = $region36
      $region35: #{tpu_custom_call.1} parent=5 // pred_region
        %s208 = ssub.s32 %s13, 2
        // Predicated region
        $region37: #{tpu_custom_call.1} parent=35 // pred_check
          %p209 = pneg %p95
        $region38: #{tpu_custom_call.1} parent=35 // pred_check_branch
          %211 = sbr.rel (%p209) target = $region40
        $region39: #{tpu_custom_call.1} parent=35 // pred_region
          %s212 = sand.u32 %s80, 1
          %s213 = scalar_lea.sflag [#allocation4], %s212
          %s214 = sand.u32 %s80, 1
          %s215 = smul.addr %s214, 32
          %s216 = scalar_lea.vmem [#allocation5], %s215
          %218 = dma.done %s213, 512
        $region40: #{tpu_custom_call.1} parent=35 // pred_fallthru
          _
      $region36: #{tpu_custom_call.1} parent=5 // pred_fallthru
        _
    $region6: #{tpu_custom_call.1} parent=1 // loop_footer
      %s17 = sadd.s32 1, %s13
    $region7: #{tpu_custom_call.1} parent=1 // loop_footer_branch
      %12 = sbr.rel target = $region3
    $region8: #{tpu_custom_call.1} parent=1 // loop_exit
      _
    %219 = vsyncpa [#allocation3], 1
    %s220 = scalar_lea.sflag [#allocation3], 1
    %221 = vsyncpa %s220, 1
    %222 = vsyncpa [#allocation4], 1
    %s223 = scalar_lea.sflag [#allocation4], 1
    %224 = vsyncpa %s223, 1

</llo_original>
